<compile_context>
chip_gen: v7x
topology: tpu7x:2x2x1
jax: 0.10.0
libtpu: 0.0.40
codegen_flags: <defaults>
</compile_context>

<pallas_src>
import jax
import jax.numpy as jnp
from jax.experimental import pallas as pl
from jax.experimental.pallas import tpu as pltpu


_LANE = 128


def _round_up(v, m):
    return ((v + m - 1) // m) * m


# ---------------------------------------------------------------------------
# Fused kernel: adj@adj -> degree normalization -> all GCN layers (+bias +ReLU)
# ---------------------------------------------------------------------------
def _make_fused_kernel(num_layers, adj_first):
    """adj_first[l]=True  -> out_l = ((D^-1/2 A)(D^-1/2 h)) @ W_l
       adj_first[l]=False -> out_l =  (D^-1/2 A)(D^-1/2 (h @ W_l))            (reference order)"""

    def kernel(*refs):
        adj_ref, x_ref = refs[0], refs[1]
        w_refs = [refs[2 + 2 * l] for l in range(num_layers)]
        b_refs = [refs[3 + 2 * l] for l in range(num_layers)]
        out_refs = refs[2 + 2 * num_layers:]

        # adj_2 = adj @ adj  (bf16 operands are exact for a 0/1 adjacency, f32 accumulate)
        adj = adj_ref[...]
        adj2 = jnp.dot(adj, adj, preferred_element_type=jnp.float32)

        # deg = adj_2.sum(-1).clamp(min=1);  d^-1/2 as an [N, 1] column (rsqrt -> EUP).
        deg = jnp.sum(adj2, axis=1, keepdims=True)
        dinv = jax.lax.rsqrt(jnp.maximum(deg, 1.0))

        # Row-scaled adjacency D^-1/2 A.  The column scale D^-1/2 is applied to the
        # right-hand matmul operand each layer instead (mathematically identical), which
        # removes the diag-matmul / iota / eye work and any cross-lane transpose of dinv.
        row_scaled = dinv * adj2

        h = x_ref[...]
        for l in range(num_layers):
            w = w_refs[l][...]
            b = b_refs[l][...]
            if adj_first[l]:
                agg = jnp.dot(row_scaled, dinv * h,
                              preferred_element_type=jnp.float32)
                out = jnp.dot(agg, w, preferred_element_type=jnp.float32)
            else:
                hw = jnp.dot(h, w, preferred_element_type=jnp.float32)
                out = jnp.dot(row_scaled, dinv * hw,
                              preferred_element_type=jnp.float32)
            out = jnp.maximum(out + b, 0.0)  # bias + ReLU; dropout(0.1) is identity in eval
            out_refs[l][...] = out
            h = out

    return kernel


# ---------------------------------------------------------------------------
# Wrapper: pad to lane-dense 128-multiples, run the fused kernel, slice padding
# ---------------------------------------------------------------------------
def dense_gcn_model_seman(x, adj, weights, biases):
    """Mirrors DenseGCNModelSeman.forward: returns the list of per-layer embeddings [N, F_l]."""
    n, f_in = x.shape
    num_layers = len(weights)
    dims = [f_in] + [w.shape[1] for w in weights]

    n_p = _round_up(n, _LANE)
    dims_p = [_round_up(d, _LANE) for d in dims]

    # Zero padding is exact: padded adjacency rows/cols are zero, padded feature columns are
    # zero, padded-node degrees clamp to 1 and never contribute to real nodes.
    adj_p = jnp.zeros((n_p, n_p), jnp.bfloat16).at[:n, :n].set(adj.astype(jnp.bfloat16))
    x_p = jnp.zeros((n_p, dims_p[0]), jnp.float32).at[:n, :f_in].set(x.astype(jnp.float32))

    args = [adj_p, x_p]
    in_specs = [
        pl.BlockSpec((n_p, n_p), lambda i: (0, 0)),
        pl.BlockSpec((n_p, dims_p[0]), lambda i: (0, 0)),
    ]
    adj_first = []
    for l, (w, b) in enumerate(zip(weights, biases)):
        fi, fo = dims[l], dims[l + 1]
        fi_p, fo_p = dims_p[l], dims_p[l + 1]
        w_p = jnp.zeros((fi_p, fo_p), jnp.float32).at[:fi, :fo].set(w.astype(jnp.float32))
        b_p = jnp.zeros((1, fo_p), jnp.float32).at[:, :fo].set(
            jnp.reshape(b, (1, fo)).astype(jnp.float32))
        args += [w_p, b_p]
        in_specs += [
            pl.BlockSpec((fi_p, fo_p), lambda i: (0, 0)),
            pl.BlockSpec((1, fo_p), lambda i: (0, 0)),
        ]
        # Contract the adjacency against the narrower feature dim (dominant N^2*F term).
        adj_first.append(fi_p < fo_p)

    out_shapes = tuple(
        jax.ShapeDtypeStruct((n_p, dims_p[l + 1]), jnp.float32) for l in range(num_layers)
    )
    out_specs = tuple(
        pl.BlockSpec((n_p, dims_p[l + 1]), lambda i: (0, 0)) for l in range(num_layers)
    )

    outs = pl.pallas_call(
        _make_fused_kernel(num_layers, tuple(adj_first)),
        out_shape=out_shapes,
        grid=(1,),
        in_specs=in_specs,
        out_specs=out_specs,
        compiler_params=pltpu.CompilerParams(
            dimension_semantics=("arbitrary",),
        ),
    )(*args)

    # Slice off the lane/sublane padding (this is the torch.squeeze(out, 0) equivalent shape).
    return [outs[l][:n, :dims[l + 1]] for l in range(num_layers)]


# ---------------------------------------------------------------------------
# Pure-JAX reference (ground-truth f32 semantics of the PyTorch module)
# ---------------------------------------------------------------------------
def reference(x, adj, weights, biases):
    hp = jax.lax.Precision.HIGHEST
    adj2 = jnp.matmul(adj, adj, precision=hp)
    deg = jnp.maximum(jnp.sum(adj2, axis=-1), 1.0)
    dinv = deg ** -0.5
    adj_n = dinv[:, None] * adj2 * dinv[None, :]
    outs = []
    h = x
    for w, b in zip(weights, biases):
        h = jnp.maximum(
            jnp.matmul(adj_n, jnp.matmul(h, w, precision=hp), precision=hp)
            + jnp.reshape(b, (1, -1)),
            0.0,
        )
        outs.append(h)
    return outs


if __name__ == "__main__":
    key = jax.random.PRNGKey(0)
    k_x, k_adj, k_w0, k_w1, k_b0, k_b1 = jax.random.split(key, 6)

    # Small deterministic problem: N = num_drug + num_target = 8 + 8 = 16 nodes,
    # layers_dim = [32, 64, 32] -> two DenseGCNConv layers.
    num_drug, num_target = 8, 8
    n = num_drug + num_target
    layers_dim = [32, 64, 32]

    x = jax.random.normal(k_x, (n, layers_dim[0]), dtype=jnp.float32)

    # Symmetric 0/1 adjacency without self loops.
    a = (jax.random.uniform(k_adj, (n, n)) < 0.3).astype(jnp.float32)
    adj = jnp.clip(a + a.T, 0.0, 1.0)
    adj = adj * (1.0 - jnp.eye(n, dtype=jnp.float32))

    # Deterministic parameter init.
    w0 = jax.random.normal(k_w0, (layers_dim[0], layers_dim[1]), dtype=jnp.float32) * 0.1
    w1 = jax.random.normal(k_w1, (layers_dim[1], layers_dim[2]), dtype=jnp.float32) * 0.1
    b0 = jax.random.normal(k_b0, (1, layers_dim[1]), dtype=jnp.float32) * 0.01
    b1 = jax.random.normal(k_b1, (1, layers_dim[2]), dtype=jnp.float32) * 0.01
    weights = [w0, w1]
    biases = [b0, b1]

    outs = dense_gcn_model_seman(x, adj, weights, biases)
    outs = [jax.block_until_ready(o) for o in outs]

    refs = reference(x, adj, weights, biases)
    for o, r in zip(outs, refs):
        assert o.shape == r.shape
        # Tolerance absorbs MXU f32-matmul pass-count differences between the Pallas kernel
        # and the XLA reference plus the (exact-math) re-association of the degree scaling;
        # real bugs show up as O(1) errors.
        assert jnp.allclose(o, r, atol=2e-2, rtol=2e-2), "mismatch vs reference"

    print("KERNEL_OK")
</pallas_src>

<mosaic_0001>
module attributes {stable_mosaic.version = 11 : i64} {
  func.func @kernel(%arg0: i32, %arg1: memref<128x128xbf16, #tpu.memory_space<vmem>>, %arg2: memref<128x128xf32, #tpu.memory_space<vmem>>, %arg3: memref<128x128xf32, #tpu.memory_space<vmem>>, %arg4: memref<1x128xf32, #tpu.memory_space<vmem>>, %arg5: memref<128x128xf32, #tpu.memory_space<vmem>>, %arg6: memref<1x128xf32, #tpu.memory_space<vmem>>, %arg7: memref<128x128xf32, #tpu.memory_space<vmem>>, %arg8: memref<128x128xf32, #tpu.memory_space<vmem>>) attributes {dimension_semantics = [#tpu.dimension_semantics<arbitrary>], iteration_bounds = array<i64: 1>, scalar_prefetch = 0 : i64, scratch_operands = 0 : i64, tpu.core_type = #tpu.core_type<tc>, window_params = [{pipeline_mode = #tpu.pipeline_mode<synchronous>, transform_indices = @transform_0, window_bounds = array<i64: 128, 128>}, {pipeline_mode = #tpu.pipeline_mode<synchronous>, transform_indices = @transform_1, window_bounds = array<i64: 128, 128>}, {pipeline_mode = #tpu.pipeline_mode<synchronous>, transform_indices = @transform_2, window_bounds = array<i64: 128, 128>}, {pipeline_mode = #tpu.pipeline_mode<synchronous>, transform_indices = @transform_3, window_bounds = array<i64: 1, 128>}, {pipeline_mode = #tpu.pipeline_mode<synchronous>, transform_indices = @transform_4, window_bounds = array<i64: 128, 128>}, {pipeline_mode = #tpu.pipeline_mode<synchronous>, transform_indices = @transform_5, window_bounds = array<i64: 1, 128>}, {pipeline_mode = #tpu.pipeline_mode<synchronous>, transform_indices = @transform_6, window_bounds = array<i64: 128, 128>}, {pipeline_mode = #tpu.pipeline_mode<synchronous>, transform_indices = @transform_7, window_bounds = array<i64: 128, 128>}]} {
    %c0 = arith.constant 0 : index
    %c0_0 = arith.constant 0 : index
    %0 = vector.load %arg1[%c0, %c0_0] : memref<128x128xbf16, #tpu.memory_space<vmem>>, vector<128x128xbf16>
    %cst = arith.constant dense<0.000000e+00> : vector<128x128xf32>
    %1 = tpu.matmul %0, %0, %cst {dimension_numbers = #tpu.dot_dimension_numbers<[1], [0], [0], [1], [0, 0, 1, 1], [], []>} : vector<128x128xbf16>, vector<128x128xbf16>, vector<128x128xf32> -> vector<128x128xf32>
    %cst_1 = arith.constant dense<0.000000e+00> : vector<128xf32>
    %2 = vector.multi_reduction <add>, %1, %cst_1 [1] : vector<128x128xf32> to vector<128xf32>
    %3 = vector.shape_cast %2 : vector<128xf32> to vector<128x1xf32>
    %cst_2 = arith.constant 1.000000e+00 : f32
    %4 = vector.broadcast %cst_2 : f32 to vector<128x1xf32>
    %5 = arith.maximumf %3, %4 : vector<128x1xf32>
    %6 = math.rsqrt %5 : vector<128x1xf32>
    %7 = vector.broadcast %6 : vector<128x1xf32> to vector<128x128xf32>
    %8 = arith.mulf %7, %1 : vector<128x128xf32>
    %c0_3 = arith.constant 0 : index
    %c0_4 = arith.constant 0 : index
    %9 = vector.load %arg2[%c0_3, %c0_4] : memref<128x128xf32, #tpu.memory_space<vmem>>, vector<128x128xf32>
    %c0_5 = arith.constant 0 : index
    %c0_6 = arith.constant 0 : index
    %10 = vector.load %arg3[%c0_5, %c0_6] : memref<128x128xf32, #tpu.memory_space<vmem>>, vector<128x128xf32>
    %c0_7 = arith.constant 0 : index
    %c0_8 = arith.constant 0 : index
    %11 = vector.load %arg4[%c0_7, %c0_8] : memref<1x128xf32, #tpu.memory_space<vmem>>, vector<1x128xf32>
    %cst_9 = arith.constant dense<0.000000e+00> : vector<128x128xf32>
    %12 = tpu.matmul %9, %10, %cst_9 {dimension_numbers = #tpu.dot_dimension_numbers<[1], [0], [0], [1], [0, 0, 1, 1], [], []>} : vector<128x128xf32>, vector<128x128xf32>, vector<128x128xf32> -> vector<128x128xf32>
    %13 = vector.broadcast %6 : vector<128x1xf32> to vector<128x128xf32>
    %14 = arith.mulf %13, %12 : vector<128x128xf32>
    %cst_10 = arith.constant dense<0.000000e+00> : vector<128x128xf32>
    %15 = tpu.matmul %8, %14, %cst_10 {dimension_numbers = #tpu.dot_dimension_numbers<[1], [0], [0], [1], [0, 0, 1, 1], [], []>} : vector<128x128xf32>, vector<128x128xf32>, vector<128x128xf32> -> vector<128x128xf32>
    %16 = vector.broadcast %11 : vector<1x128xf32> to vector<128x128xf32>
    %17 = arith.addf %15, %16 : vector<128x128xf32>
    %cst_11 = arith.constant 0.000000e+00 : f32
    %18 = vector.broadcast %cst_11 : f32 to vector<128x128xf32>
    %19 = arith.maximumf %17, %18 : vector<128x128xf32>
    %c0_12 = arith.constant 0 : index
    %c0_13 = arith.constant 0 : index
    %20 = vector.load %arg7[%c0_12, %c0_13] : memref<128x128xf32, #tpu.memory_space<vmem>>, vector<128x128xf32>
    tpu.vector_store %arg7[%c0_12, %c0_13], %19 {strides = array<i32>} : memref<128x128xf32, #tpu.memory_space<vmem>>, vector<128x128xf32>,
    %c0_14 = arith.constant 0 : index
    %c0_15 = arith.constant 0 : index
    %21 = vector.load %arg5[%c0_14, %c0_15] : memref<128x128xf32, #tpu.memory_space<vmem>>, vector<128x128xf32>
    %c0_16 = arith.constant 0 : index
    %c0_17 = arith.constant 0 : index
    %22 = vector.load %arg6[%c0_16, %c0_17] : memref<1x128xf32, #tpu.memory_space<vmem>>, vector<1x128xf32>
    %cst_18 = arith.constant dense<0.000000e+00> : vector<128x128xf32>
    %23 = tpu.matmul %19, %21, %cst_18 {dimension_numbers = #tpu.dot_dimension_numbers<[1], [0], [0], [1], [0, 0, 1, 1], [], []>} : vector<128x128xf32>, vector<128x128xf32>, vector<128x128xf32> -> vector<128x128xf32>
    %24 = vector.broadcast %6 : vector<128x1xf32> to vector<128x128xf32>
    %25 = arith.mulf %24, %23 : vector<128x128xf32>
    %cst_19 = arith.constant dense<0.000000e+00> : vector<128x128xf32>
    %26 = tpu.matmul %8, %25, %cst_19 {dimension_numbers = #tpu.dot_dimension_numbers<[1], [0], [0], [1], [0, 0, 1, 1], [], []>} : vector<128x128xf32>, vector<128x128xf32>, vector<128x128xf32> -> vector<128x128xf32>
    %27 = vector.broadcast %22 : vector<1x128xf32> to vector<128x128xf32>
    %28 = arith.addf %26, %27 : vector<128x128xf32>
    %cst_20 = arith.constant 0.000000e+00 : f32
    %29 = vector.broadcast %cst_20 : f32 to vector<128x128xf32>
    %30 = arith.maximumf %28, %29 : vector<128x128xf32>
    %c0_21 = arith.constant 0 : index
    %c0_22 = arith.constant 0 : index
    %31 = vector.load %arg8[%c0_21, %c0_22] : memref<128x128xf32, #tpu.memory_space<vmem>>, vector<128x128xf32>
    tpu.vector_store %arg8[%c0_21, %c0_22], %30 {strides = array<i32>} : memref<128x128xf32, #tpu.memory_space<vmem>>, vector<128x128xf32>,
    return
  }
  func.func @transform_0(%arg0: i32) -> (i32, i32) {
    %c0_i32 = arith.constant 0 : i32
    %c0_i32_0 = arith.constant 0 : i32
    %c0_i32_1 = arith.constant 0 : i32
    return %c0_i32, %c0_i32_0 : i32, i32
  }
  func.func @transform_1(%arg0: i32) -> (i32, i32) {
    %c0_i32 = arith.constant 0 : i32
    %c0_i32_0 = arith.constant 0 : i32
    %c0_i32_1 = arith.constant 0 : i32
    return %c0_i32, %c0_i32_0 : i32, i32
  }
  func.func @transform_2(%arg0: i32) -> (i32, i32) {
    %c0_i32 = arith.constant 0 : i32
    %c0_i32_0 = arith.constant 0 : i32
    %c0_i32_1 = arith.constant 0 : i32
    return %c0_i32, %c0_i32_0 : i32, i32
  }
  func.func @transform_3(%arg0: i32) -> (i32, i32) {
    %c0_i32 = arith.constant 0 : i32
    %c0_i32_0 = arith.constant 0 : i32
    %c0_i32_1 = arith.constant 0 : i32
    return %c0_i32, %c0_i32_0 : i32, i32
  }
  func.func @transform_4(%arg0: i32) -> (i32, i32) {
    %c0_i32 = arith.constant 0 : i32
    %c0_i32_0 = arith.constant 0 : i32
    %c0_i32_1 = arith.constant 0 : i32
    return %c0_i32, %c0_i32_0 : i32, i32
  }
  func.func @transform_5(%arg0: i32) -> (i32, i32) {
    %c0_i32 = arith.constant 0 : i32
    %c0_i32_0 = arith.constant 0 : i32
    %c0_i32_1 = arith.constant 0 : i32
    return %c0_i32, %c0_i32_0 : i32, i32
  }
  func.func @transform_6(%arg0: i32) -> (i32, i32) {
    %c0_i32 = arith.constant 0 : i32
    %c0_i32_0 = arith.constant 0 : i32
    %c0_i32_1 = arith.constant 0 : i32
    return %c0_i32, %c0_i32_0 : i32, i32
  }
  func.func @transform_7(%arg0: i32) -> (i32, i32) {
    %c0_i32 = arith.constant 0 : i32
    %c0_i32_0 = arith.constant 0 : i32
    %c0_i32_1 = arith.constant 0 : i32
    return %c0_i32, %c0_i32_0 : i32, i32
  }
}

</mosaic_0001>

<llo_original>
// kernel: tpu_custom_call.1
$region0: #{tpu_custom_call.1}
  #allocation0 [shape = 'u32[]', space=smem, size = 0x4, offset = 0x4, fixed_abs, tag = 'smem constant byte address 0x4 - core index']
  #allocation1 [shape = 'u32[144,128]{1,0:T(1,128)}', space=vmem, size = 0x12000, scoped, tag = 'internal scratch']
  %s0 = inlined_call_operand.hbm [shape: bf16[128,128], index: 0, kind: input, shape index: {}]
  %s1 = inlined_call_operand.hbm [shape: f32[128,128], index: 1, kind: input, shape index: {}]
  %s2 = inlined_call_operand.hbm [shape: f32[128,128], index: 2, kind: input, shape index: {}]
  %s3 = inlined_call_operand.vmem [shape: f32[1,128], index: 3, kind: input, shape index: {}]
  %s4 = inlined_call_operand.hbm [shape: f32[128,128], index: 4, kind: input, shape index: {}]
  %s5 = inlined_call_operand.vmem [shape: f32[1,128], index: 5, kind: input, shape index: {}]
  %s6 = inlined_call_operand.hbm [shape: f32[128,128], index: 6, kind: output, shape index: {0}]
  %s7 = inlined_call_operand.hbm [shape: f32[128,128], index: 7, kind: output, shape index: {1}]
  %8 = xla_tuple %s6, %s7
  %s9 = sld [smem:[#allocation0]]
  $region58: #{tpu_custom_call.1} parent=0
    _
  %s11 = ssub.s32 1, %s9
  %s12 = scalar_select 0, %s11, %s9
  $region1: #{tpu_custom_call.1} parent=0
    #allocation2 [shape = 'u8[32768]{0}', space=vmem, size = 0x8000, scoped, tag = 'input window, operand 0, single buffered']
    #allocation3 [shape = 's32[1]{0}', space=sflag, size = 0x4, scoped, tag = 'scoped memory for tpu_custom_call.1']
    #allocation4 [shape = 's32[1]{0}', space=sflag, size = 0x4, scoped, tag = 'scoped memory for tpu_custom_call.1']
    #allocation5 [shape = 'u8[65536]{0}', space=vmem, size = 0x10000, scoped, tag = 'input window, operand 1, single buffered']
    #allocation6 [shape = 's32[1]{0}', space=sflag, size = 0x4, scoped, tag = 'scoped memory for tpu_custom_call.1']
    #allocation7 [shape = 'u8[65536]{0}', space=vmem, size = 0x10000, scoped, tag = 'input window, operand 2, single buffered']
    #allocation8 [shape = 'u8[65536]{0}', space=vmem, size = 0x10000, scoped, tag = 'input window, operand 4, single buffered']
    #allocation9 [shape = 's32[1]{0}', space=sflag, size = 0x4, scoped, tag = 'scoped memory for tpu_custom_call.1']
    #allocation10 [shape = 'u8[65536]{0}', space=vmem, size = 0x10000, scoped, tag = 'output window, operand 0, single buffered']
    #allocation11 [shape = 'u8[65536]{0}', space=vmem, size = 0x10000, scoped, tag = 'output window, operand 1, single buffered']
    #allocation12 [shape = 's32[1]{0}', space=sflag, size = 0x4, scoped, tag = 'scoped memory for tpu_custom_call.1']
    %13 = vsyncpa [#allocation3], 0
    %14 = vsyncpa [#allocation6], 0
    %15 = vsyncpa [#allocation9], 0
    %16 = vsyncpa [#allocation4], 0
    %17 = vsyncpa [#allocation12], 0
    // Predicated region
    $region2: #{tpu_custom_call.1} parent=1 // pred_check
      _
    $region3: #{tpu_custom_call.1} parent=1 // pred_check_branch
      %19 = sbr.rel (0) target = $region5
    $region4: #{tpu_custom_call.1} parent=1 // pred_region
      %s21 = ssub.s32 1024, 1024
      %22 = vsyncadd [#allocation3], %s21
      %s23 = sshll.u32 [#allocation2], 4
      %s24 = int_to_ptr.vmem [resolvable:$true] %s23
      %29 = dma.hbm_to_vmem [thread:$0]  %s0, 1024, %s24, [#allocation3], 64, 64, 4
    $region5: #{tpu_custom_call.1} parent=1 // pred_fallthru
      _
    // Predicated region
    $region6: #{tpu_custom_call.1} parent=1 // pred_check
      _
    $region7: #{tpu_custom_call.1} parent=1 // pred_check_branch
      %31 = sbr.rel (0) target = $region9
    $region8: #{tpu_custom_call.1} parent=1 // pred_region
      %s33 = ssub.s32 2048, 2048
      %34 = vsyncadd [#allocation6], %s33
      %s35 = sshll.u32 [#allocation5], 4
      %s36 = int_to_ptr.vmem [resolvable:$true] %s35
      %41 = dma.hbm_to_vmem [thread:$0]  %s1, 2048, %s36, [#allocation6], 128, 128, 8
    $region9: #{tpu_custom_call.1} parent=1 // pred_fallthru
      _
    // Predicated region
    $region10: #{tpu_custom_call.1} parent=1 // pred_check
      _
    $region11: #{tpu_custom_call.1} parent=1 // pred_check_branch
      %43 = sbr.rel (0) target = $region13
    $region12: #{tpu_custom_call.1} parent=1 // pred_region
      %s45 = ssub.s32 2048, 2048
      %46 = vsyncadd [#allocation6], %s45
      %s47 = sshll.u32 [#allocation7], 4
      %s48 = int_to_ptr.vmem [resolvable:$true] %s47
      %53 = dma.hbm_to_vmem [thread:$0]  %s2, 2048, %s48, [#allocation6], 128, 128, 8
    $region13: #{tpu_custom_call.1} parent=1 // pred_fallthru
      _
    // Predicated region
    $region14: #{tpu_custom_call.1} parent=1 // pred_check
      _
    $region15: #{tpu_custom_call.1} parent=1 // pred_check_branch
      %55 = sbr.rel (0) target = $region17
    $region16: #{tpu_custom_call.1} parent=1 // pred_region
      _
    $region17: #{tpu_custom_call.1} parent=1 // pred_fallthru
      _
    // Predicated region
    $region18: #{tpu_custom_call.1} parent=1 // pred_check
      _
    $region19: #{tpu_custom_call.1} parent=1 // pred_check_branch
      %57 = sbr.rel (0) target = $region21
    $region20: #{tpu_custom_call.1} parent=1 // pred_region
      %s59 = ssub.s32 2048, 2048
      %60 = vsyncadd [#allocation9], %s59
      %s61 = sshll.u32 [#allocation8], 4
      %s62 = int_to_ptr.vmem [resolvable:$true] %s61
      %67 = dma.hbm_to_vmem [thread:$0]  %s4, 2048, %s62, [#allocation9], 128, 128, 8
    $region21: #{tpu_custom_call.1} parent=1 // pred_fallthru
      _
    // Predicated region
    $region22: #{tpu_custom_call.1} parent=1 // pred_check
      _
    $region23: #{tpu_custom_call.1} parent=1 // pred_check_branch
      %69 = sbr.rel (0) target = $region25
    $region24: #{tpu_custom_call.1} parent=1 // pred_region
      _
    $region25: #{tpu_custom_call.1} parent=1 // pred_fallthru
      _
    // Predicated region
    $region26: #{tpu_custom_call.1} parent=1 // pred_check
      _
    $region27: #{tpu_custom_call.1} parent=1 // pred_check_branch
      %71 = sbr.rel (0) target = $region29
    $region28: #{tpu_custom_call.1} parent=1 // pred_region
      %72 = dma.done [#allocation3], 1024
    $region29: #{tpu_custom_call.1} parent=1 // pred_fallthru
      _
    // Predicated region
    $region30: #{tpu_custom_call.1} parent=1 // pred_check
      _
    $region31: #{tpu_custom_call.1} parent=1 // pred_check_branch
      %74 = sbr.rel (0) target = $region33
    $region32: #{tpu_custom_call.1} parent=1 // pred_region
      %75 = dma.done [#allocation6], 2048
    $region33: #{tpu_custom_call.1} parent=1 // pred_fallthru
      _
    // Predicated region
    $region34: #{tpu_custom_call.1} parent=1 // pred_check
      _
    $region35: #{tpu_custom_call.1} parent=1 // pred_check_branch
      %77 = sbr.rel (0) target = $region37
    $region36: #{tpu_custom_call.1} parent=1 // pred_region
      %78 = dma.done [#allocation6], 2048
    $region37: #{tpu_custom_call.1} parent=1 // pred_fallthru
      _
    // Predicated region
    $region38: #{tpu_custom_call.1} parent=1 // pred_check
      _
    $region39: #{tpu_custom_call.1} parent=1 // pred_check_branch
      %80 = sbr.rel (0) target = $region41
    $region40: #{tpu_custom_call.1} parent=1 // pred_region
      %81 = dma.done [#allocation9], 2048
    $region41: #{tpu_custom_call.1} parent=1 // pred_fallthru
      _
    %v83 = vld [vmem:[#allocation2] sm:$0xf]
    %v84 = vld [vmem:[#allocation2 + $0x4] sm:$0xf]
    %v85 = vld [vmem:[#allocation2 + $0x8] sm:$0xf]
    %v86 = vld [vmem:[#allocation2 + $0xc] sm:$0xf]
    %v87 = vld [vmem:[#allocation2 + $0x10] sm:$0xf]
    %v88 = vld [vmem:[#allocation2 + $0x14] sm:$0xf]
    %v89 = vld [vmem:[#allocation2 + $0x18] sm:$0xf]
    %v90 = vld [vmem:[#allocation2 + $0x1c] sm:$0xf]
    %v91 = vld [vmem:[#allocation2 + $0x20] sm:$0xf]
    %v92 = vld [vmem:[#allocation2 + $0x24] sm:$0xf]
    %v93 = vld [vmem:[#allocation2 + $0x28] sm:$0xf]
    %v94 = vld [vmem:[#allocation2 + $0x2c] sm:$0xf]
    %v95 = vld [vmem:[#allocation2 + $0x30] sm:$0xf]
    %v96 = vld [vmem:[#allocation2 + $0x34] sm:$0xf]
    %v97 = vld [vmem:[#allocation2 + $0x38] sm:$0xf]
    %v98 = vld [vmem:[#allocation2 + $0x3c] sm:$0xf]
    %v115 = vunpack.c.l.b16 %v83
    %v116 = vunpack.c.l.b16 %v84
    %v117 = vunpack.c.l.b16 %v85
    %v118 = vunpack.c.l.b16 %v86
    %v119 = vunpack.c.l.b16 %v87
    %v120 = vunpack.c.l.b16 %v88
    %v121 = vunpack.c.l.b16 %v89
    %v122 = vunpack.c.l.b16 %v90
    %v123 = vunpack.c.l.b16 %v91
    %v124 = vunpack.c.l.b16 %v92
    %v125 = vunpack.c.l.b16 %v93
    %v126 = vunpack.c.l.b16 %v94
    %v127 = vunpack.c.l.b16 %v95
    %v128 = vunpack.c.l.b16 %v96
    %v129 = vunpack.c.l.b16 %v97
    %v130 = vunpack.c.l.b16 %v98
    %v131 = vpack.c.b16 %v116, %v115
    %v132 = vpack.c.b16 %v118, %v117
    %v133 = vpack.c.b16 %v120, %v119
    %v134 = vpack.c.b16 %v122, %v121
    %v135 = vpack.c.b16 %v124, %v123
    %v136 = vpack.c.b16 %v126, %v125
    %v137 = vpack.c.b16 %v128, %v127
    %v138 = vpack.c.b16 %v130, %v129
    %147 = vmatprep.subr.bf16.mxu0 0
    %148 = vmatpush1.bf16.msra.mxu0 %v131
    %149 = vmatprep.subr.bf16.mxu0 0
    %150 = vmatpush1.bf16.msra.mxu0 %v132
    %151 = vmatprep.subr.bf16.mxu0 0
    %152 = vmatpush1.bf16.msra.mxu0 %v133
    %153 = vmatprep.subr.bf16.mxu0 0
    %154 = vmatpush1.bf16.msra.mxu0 %v134
    %155 = vmatprep.subr.bf16.mxu0 0
    %156 = vmatpush1.bf16.msra.mxu0 %v135
    %157 = vmatprep.subr.bf16.mxu0 0
    %158 = vmatpush1.bf16.msra.mxu0 %v136
    %159 = vmatprep.subr.bf16.mxu0 0
    %160 = vmatpush1.bf16.msra.mxu0 %v137
    %161 = vmatprep.subr.bf16.mxu0 0
    %162 = vmatpush1.bf16.msra.mxu0 %v138
    %163 = vmatprep.subr.bf16.mxu0 0
    %164 = vmatpush1.bf16.msra.mxu0 0
    %165 = vmatprep.subr.bf16.mxu0 0
    %166 = vmatpush1.bf16.msra.mxu0 0
    %167 = vmatprep.subr.bf16.mxu0 0
    %168 = vmatpush1.bf16.msra.mxu0 0
    %169 = vmatprep.subr.bf16.mxu0 0
    %170 = vmatpush1.bf16.msra.mxu0 0
    %171 = vmatprep.subr.bf16.mxu0 0
    %172 = vmatpush1.bf16.msra.mxu0 0
    %173 = vmatprep.subr.bf16.mxu0 0
    %174 = vmatpush1.bf16.msra.mxu0 0
    %175 = vmatprep.subr.bf16.mxu0 0
    %176 = vmatpush1.bf16.msra.mxu0 0
    %177 = vmatprep.subr.bf16.mxu0 0
    %178 = vmatpush1.bf16.msra.mxu0 0
    %179 = vmatprep.mubr.bf16.mxu0 0
    %180 = vmatmul.mubr.bf16.gmra.mrb[0].mxu0 %v131
    %v181 = vpop.f32.mrb[0].mxu0
    %v182 = vadd.f32 0.0, %v181
    %v183 = vpop.f32.mrb[0].mxu0
    %v184 = vpop.f32.mrb[0].mxu0
    %v185 = vadd.f32 0.0, %v184
    %v186 = vpop.f32.mrb[0].mxu0
    %187 = vmatprep.mubr.bf16.mxu0 0
    %188 = vmatmul.mubr.bf16.gmra.mrb[0].mxu0 %v132
    %v189 = vpop.f32.mrb[0].mxu0
    %v190 = vadd.f32 0.0, %v189
    %v191 = vpop.f32.mrb[0].mxu0
    %v192 = vpop.f32.mrb[0].mxu0
    %v193 = vadd.f32 0.0, %v192
    %v194 = vpop.f32.mrb[0].mxu0
    %195 = vmatprep.mubr.bf16.mxu0 0
    %196 = vmatmul.mubr.bf16.gmra.mrb[0].mxu0 %v133
    %v197 = vpop.f32.mrb[0].mxu0
    %v198 = vadd.f32 0.0, %v197
    %v199 = vpop.f32.mrb[0].mxu0
    %v200 = vpop.f32.mrb[0].mxu0
    %v201 = vadd.f32 0.0, %v200
    %v202 = vpop.f32.mrb[0].mxu0
    %203 = vmatprep.mubr.bf16.mxu0 0
    %204 = vmatmul.mubr.bf16.gmra.mrb[0].mxu0 %v134
    %v205 = vpop.f32.mrb[0].mxu0
    %v206 = vadd.f32 0.0, %v205
    %v207 = vpop.f32.mrb[0].mxu0
    %v208 = vpop.f32.mrb[0].mxu0
    %v209 = vadd.f32 0.0, %v208
    %v210 = vpop.f32.mrb[0].mxu0
    %211 = vmatprep.mubr.bf16.mxu0 0
    %212 = vmatmul.mubr.bf16.gmra.mrb[0].mxu0 %v135
    %v213 = vpop.f32.mrb[0].mxu0
    %v214 = vadd.f32 0.0, %v213
    %v215 = vpop.f32.mrb[0].mxu0
    %v216 = vpop.f32.mrb[0].mxu0
    %v217 = vadd.f32 0.0, %v216
    %v218 = vpop.f32.mrb[0].mxu0
    %219 = vmatprep.mubr.bf16.mxu0 0
    %220 = vmatmul.mubr.bf16.gmra.mrb[0].mxu0 %v136
    %v221 = vpop.f32.mrb[0].mxu0
    %v222 = vadd.f32 0.0, %v221
    %v223 = vpop.f32.mrb[0].mxu0
    %v224 = vpop.f32.mrb[0].mxu0
    %v225 = vadd.f32 0.0, %v224
    %v226 = vpop.f32.mrb[0].mxu0
    %227 = vmatprep.mubr.bf16.mxu0 0
    %228 = vmatmul.mubr.bf16.gmra.mrb[0].mxu0 %v137
    %v229 = vpop.f32.mrb[0].mxu0
    %v230 = vadd.f32 0.0, %v229
    %v231 = vpop.f32.mrb[0].mxu0
    %v232 = vpop.f32.mrb[0].mxu0
    %v233 = vadd.f32 0.0, %v232
    %v234 = vpop.f32.mrb[0].mxu0
    %235 = vmatprep.mubr.bf16.mxu0 0
    %236 = vmatmul.mubr.bf16.gmra.mrb[0].mxu0 %v138
    %v237 = vpop.f32.mrb[0].mxu0
    %v238 = vadd.f32 0.0, %v237
    %v239 = vpop.f32.mrb[0].mxu0
    %v240 = vpop.f32.mrb[0].mxu0
    %v241 = vadd.f32 0.0, %v240
    %v242 = vpop.f32.mrb[0].mxu0
    %243 = vdwg.mxu0
    %244 = vadd.xlane.f32.xlu0 %v182
    %v245 = vpop.xlane.xlu0 %244
    %246 = vadd.xlane.f32.xlu0 %v185
    %v247 = vpop.xlane.xlu0 %246
    %248 = vadd.xlane.f32.xlu0 %v190
    %v249 = vpop.xlane.xlu0 %248
    %250 = vadd.xlane.f32.xlu0 %v193
    %v251 = vpop.xlane.xlu0 %250
    %252 = vadd.xlane.f32.xlu0 %v198
    %v253 = vpop.xlane.xlu0 %252
    %254 = vadd.xlane.f32.xlu0 %v201
    %v255 = vpop.xlane.xlu0 %254
    %256 = vadd.xlane.f32.xlu0 %v206
    %v257 = vpop.xlane.xlu0 %256
    %258 = vadd.xlane.f32.xlu0 %v209
    %v259 = vpop.xlane.xlu0 %258
    %260 = vadd.xlane.f32.xlu0 %v214
    %v261 = vpop.xlane.xlu0 %260
    %262 = vadd.xlane.f32.xlu0 %v217
    %v263 = vpop.xlane.xlu0 %262
    %264 = vadd.xlane.f32.xlu0 %v222
    %v265 = vpop.xlane.xlu0 %264
    %266 = vadd.xlane.f32.xlu0 %v225
    %v267 = vpop.xlane.xlu0 %266
    %268 = vadd.xlane.f32.xlu0 %v230
    %v269 = vpop.xlane.xlu0 %268
    %270 = vadd.xlane.f32.xlu0 %v233
    %v271 = vpop.xlane.xlu0 %270
    %272 = vadd.xlane.f32.xlu0 %v238
    %v273 = vpop.xlane.xlu0 %272
    %274 = vadd.xlane.f32.xlu0 %v241
    %v275 = vpop.xlane.xlu0 %274
    %v276 = vmax.f32 %v245, 1.0
    %v277 = vmax.f32 %v247, 1.0
    %v278 = vmax.f32 %v249, 1.0
    %v279 = vmax.f32 %v251, 1.0
    %v280 = vmax.f32 %v253, 1.0
    %v281 = vmax.f32 %v255, 1.0
    %v282 = vmax.f32 %v257, 1.0
    %v283 = vmax.f32 %v259, 1.0
    %v284 = vmax.f32 %v261, 1.0
    %v285 = vmax.f32 %v263, 1.0
    %v286 = vmax.f32 %v265, 1.0
    %v287 = vmax.f32 %v267, 1.0
    %v288 = vmax.f32 %v269, 1.0
    %v289 = vmax.f32 %v271, 1.0
    %v290 = vmax.f32 %v273, 1.0
    %v291 = vmax.f32 %v275, 1.0
    %v292 = vrsqrt.pop %v276
    %v293 = vrsqrt.pop %v277
    %v294 = vrsqrt.pop %v278
    %v295 = vrsqrt.pop %v279
    %v296 = vrsqrt.pop %v280
    %v297 = vrsqrt.pop %v281
    %v298 = vrsqrt.pop %v282
    %v299 = vrsqrt.pop %v283
    %v300 = vrsqrt.pop %v284
    %v301 = vrsqrt.pop %v285
    %v302 = vrsqrt.pop %v286
    %v303 = vrsqrt.pop %v287
    %v304 = vrsqrt.pop %v288
    %v305 = vrsqrt.pop %v289
    %v306 = vrsqrt.pop %v290
    %v307 = vrsqrt.pop %v291
    %v308 = vmul.f32 %v292, %v182
    %v309 = vmul.f32 %v293, %v185
    %v310 = vmul.f32 %v294, %v190
    %v311 = vmul.f32 %v295, %v193
    %v312 = vmul.f32 %v296, %v198
    %v313 = vmul.f32 %v297, %v201
    %v314 = vmul.f32 %v298, %v206
    %v315 = vmul.f32 %v299, %v209
    %v316 = vmul.f32 %v300, %v214
    %v317 = vmul.f32 %v301, %v217
    %v318 = vmul.f32 %v302, %v222
    %v319 = vmul.f32 %v303, %v225
    %v320 = vmul.f32 %v304, %v230
    %v321 = vmul.f32 %v305, %v233
    %v322 = vmul.f32 %v306, %v238
    %v323 = vmul.f32 %v307, %v241
    %v324 = vld [vmem:[#allocation5] sm:$0xff]
    %v325 = vld [vmem:[#allocation5 + $0x8] sm:$0xff]
    %v326 = vld [vmem:[#allocation5 + $0x10] sm:$0xff]
    %v327 = vld [vmem:[#allocation5 + $0x18] sm:$0xff]
    %v328 = vld [vmem:[#allocation5 + $0x20] sm:$0xff]
    %v329 = vld [vmem:[#allocation5 + $0x28] sm:$0xff]
    %v330 = vld [vmem:[#allocation5 + $0x30] sm:$0xff]
    %v331 = vld [vmem:[#allocation5 + $0x38] sm:$0xff]
    %v332 = vld [vmem:[#allocation5 + $0x40] sm:$0xff]
    %v333 = vld [vmem:[#allocation5 + $0x48] sm:$0xff]
    %v334 = vld [vmem:[#allocation5 + $0x50] sm:$0xff]
    %v335 = vld [vmem:[#allocation5 + $0x58] sm:$0xff]
    %v336 = vld [vmem:[#allocation5 + $0x60] sm:$0xff]
    %v337 = vld [vmem:[#allocation5 + $0x68] sm:$0xff]
    %v338 = vld [vmem:[#allocation5 + $0x70] sm:$0xff]
    %v339 = vld [vmem:[#allocation5 + $0x78] sm:$0xff]
    %v340 = vld [vmem:[#allocation7] sm:$0xff]
    %v341 = vld [vmem:[#allocation7 + $0x8] sm:$0xff]
    %v342 = vld [vmem:[#allocation7 + $0x10] sm:$0xff]
    %v343 = vld [vmem:[#allocation7 + $0x18] sm:$0xff]
    %v344 = vld [vmem:[#allocation7 + $0x20] sm:$0xff]
    %v345 = vld [vmem:[#allocation7 + $0x28] sm:$0xff]
    %v346 = vld [vmem:[#allocation7 + $0x30] sm:$0xff]
    %v347 = vld [vmem:[#allocation7 + $0x38] sm:$0xff]
    %v348 = vld [vmem:[#allocation7 + $0x40] sm:$0xff]
    %v349 = vld [vmem:[#allocation7 + $0x48] sm:$0xff]
    %v350 = vld [vmem:[#allocation7 + $0x50] sm:$0xff]
    %v351 = vld [vmem:[#allocation7 + $0x58] sm:$0xff]
    %v352 = vld [vmem:[#allocation7 + $0x60] sm:$0xff]
    %v353 = vld [vmem:[#allocation7 + $0x68] sm:$0xff]
    %v354 = vld [vmem:[#allocation7 + $0x70] sm:$0xff]
    %v355 = vld [vmem:[#allocation7 + $0x78] sm:$0xff]
    %v356 = vld [vmem:[%s3] sm:$0x1]
    %357 = vmatprep.subr.mxu0 0.0
    %358 = vmatpush1.msra.mxu0 %v340
    %359 = vmatprep.subr.mxu0 0.0
    %360 = vmatpush1.msra.mxu0 %v341
    %361 = vmatprep.subr.mxu0 0.0
    %362 = vmatpush1.msra.mxu0 %v342
    %363 = vmatprep.subr.mxu0 0.0
    %364 = vmatpush1.msra.mxu0 %v343
    %365 = vmatprep.subr.mxu0 0.0
    %366 = vmatpush1.msra.mxu0 %v344
    %367 = vmatprep.subr.mxu0 0.0
    %368 = vmatpush1.msra.mxu0 %v345
    %369 = vmatprep.subr.mxu0 0.0
    %370 = vmatpush1.msra.mxu0 %v346
    %371 = vmatprep.subr.mxu0 0.0
    %372 = vmatpush1.msra.mxu0 %v347
    %373 = vmatprep.subr.mxu0 0.0
    %374 = vmatpush1.msra.mxu0 %v348
    %375 = vmatprep.subr.mxu0 0.0
    %376 = vmatpush1.msra.mxu0 %v349
    %377 = vmatprep.subr.mxu0 0.0
    %378 = vmatpush1.msra.mxu0 %v350
    %379 = vmatprep.subr.mxu0 0.0
    %380 = vmatpush1.msra.mxu0 %v351
    %381 = vmatprep.subr.mxu0 0.0
    %382 = vmatpush1.msra.mxu0 %v352
    %383 = vmatprep.subr.mxu0 0.0
    %384 = vmatpush1.msra.mxu0 %v353
    %385 = vmatprep.subr.mxu0 0.0
    %386 = vmatpush1.msra.mxu0 %v354
    %387 = vmatprep.subr.mxu0 0.0
    %388 = vmatpush1.msra.mxu0 %v355
    %389 = vmatprep.subr.mxu0 0.0
    %390 = vmatpush1.msra.mxu0 0.0
    %391 = vmatprep.subr.mxu0 0.0
    %392 = vmatpush1.msra.mxu0 0.0
    %393 = vmatprep.subr.mxu0 0.0
    %394 = vmatpush1.msra.mxu0 0.0
    %395 = vmatprep.subr.mxu0 0.0
    %396 = vmatpush1.msra.mxu0 0.0
    %397 = vmatprep.subr.mxu0 0.0
    %398 = vmatpush1.msra.mxu0 0.0
    %399 = vmatprep.subr.mxu0 0.0
    %400 = vmatpush1.msra.mxu0 0.0
    %401 = vmatprep.subr.mxu0 0.0
    %402 = vmatpush1.msra.mxu0 0.0
    %403 = vmatprep.subr.mxu0 0.0
    %404 = vmatpush1.msra.mxu0 0.0
    %405 = vmatprep.subr.mxu0 0.0
    %406 = vmatpush1.msra.mxu0 0.0
    %407 = vmatprep.subr.mxu0 0.0
    %408 = vmatpush1.msra.mxu0 0.0
    %409 = vmatprep.subr.mxu0 0.0
    %410 = vmatpush1.msra.mxu0 0.0
    %411 = vmatprep.subr.mxu0 0.0
    %412 = vmatpush1.msra.mxu0 0.0
    %413 = vmatprep.subr.mxu0 0.0
    %414 = vmatpush1.msra.mxu0 0.0
    %415 = vmatprep.subr.mxu0 0.0
    %416 = vmatpush1.msra.mxu0 0.0
    %417 = vmatprep.subr.mxu0 0.0
    %418 = vmatpush1.msra.mxu0 0.0
    %419 = vmatprep.subr.mxu0 0.0
    %420 = vmatpush1.msra.mxu0 0.0
    %421 = vmatprep.mubr.f32.mxu0 0.0
    %422 = vmatmul.mubr.f32.gmra.mrb[0].mxu0 %v324
    %v423 = vpop.f32.mrb[0].mxu0
    %v424 = vadd.f32 0.0, %v423
    %v425 = vpop.f32.mrb[0].mxu0
    %426 = vmatprep.mubr.f32.mxu0 0.0
    %427 = vmatmul.mubr.f32.gmra.mrb[0].mxu0 %v325
    %v428 = vpop.f32.mrb[0].mxu0
    %v429 = vadd.f32 0.0, %v428
    %v430 = vpop.f32.mrb[0].mxu0
    %431 = vmatprep.mubr.f32.mxu0 0.0
    %432 = vmatmul.mubr.f32.gmra.mrb[0].mxu0 %v326
    %v433 = vpop.f32.mrb[0].mxu0
    %v434 = vadd.f32 0.0, %v433
    %v435 = vpop.f32.mrb[0].mxu0
    %436 = vmatprep.mubr.f32.mxu0 0.0
    %437 = vmatmul.mubr.f32.gmra.mrb[0].mxu0 %v327
    %v438 = vpop.f32.mrb[0].mxu0
    %v439 = vadd.f32 0.0, %v438
    %v440 = vpop.f32.mrb[0].mxu0
    %441 = vmatprep.mubr.f32.mxu0 0.0
    %442 = vmatmul.mubr.f32.gmra.mrb[0].mxu0 %v328
    %v443 = vpop.f32.mrb[0].mxu0
    %v444 = vadd.f32 0.0, %v443
    %v445 = vpop.f32.mrb[0].mxu0
    %446 = vmatprep.mubr.f32.mxu0 0.0
    %447 = vmatmul.mubr.f32.gmra.mrb[0].mxu0 %v329
    %v448 = vpop.f32.mrb[0].mxu0
    %v449 = vadd.f32 0.0, %v448
    %v450 = vpop.f32.mrb[0].mxu0
    %451 = vmatprep.mubr.f32.mxu0 0.0
    %452 = vmatmul.mubr.f32.gmra.mrb[0].mxu0 %v330
    %v453 = vpop.f32.mrb[0].mxu0
    %v454 = vadd.f32 0.0, %v453
    %v455 = vpop.f32.mrb[0].mxu0
    %456 = vmatprep.mubr.f32.mxu0 0.0
    %457 = vmatmul.mubr.f32.gmra.mrb[0].mxu0 %v331
    %v458 = vpop.f32.mrb[0].mxu0
    %v459 = vadd.f32 0.0, %v458
    %v460 = vpop.f32.mrb[0].mxu0
    %461 = vmatprep.mubr.f32.mxu0 0.0
    %462 = vmatmul.mubr.f32.gmra.mrb[0].mxu0 %v332
    %v463 = vpop.f32.mrb[0].mxu0
    %v464 = vadd.f32 0.0, %v463
    %v465 = vpop.f32.mrb[0].mxu0
    %466 = vmatprep.mubr.f32.mxu0 0.0
    %467 = vmatmul.mubr.f32.gmra.mrb[0].mxu0 %v333
    %v468 = vpop.f32.mrb[0].mxu0
    %v469 = vadd.f32 0.0, %v468
    %v470 = vpop.f32.mrb[0].mxu0
    %471 = vmatprep.mubr.f32.mxu0 0.0
    %472 = vmatmul.mubr.f32.gmra.mrb[0].mxu0 %v334
    %v473 = vpop.f32.mrb[0].mxu0
    %v474 = vadd.f32 0.0, %v473
    %v475 = vpop.f32.mrb[0].mxu0
    %476 = vmatprep.mubr.f32.mxu0 0.0
    %477 = vmatmul.mubr.f32.gmra.mrb[0].mxu0 %v335
    %v478 = vpop.f32.mrb[0].mxu0
    %v479 = vadd.f32 0.0, %v478
    %v480 = vpop.f32.mrb[0].mxu0
    %481 = vmatprep.mubr.f32.mxu0 0.0
    %482 = vmatmul.mubr.f32.gmra.mrb[0].mxu0 %v336
    %v483 = vpop.f32.mrb[0].mxu0
    %v484 = vadd.f32 0.0, %v483
    %v485 = vpop.f32.mrb[0].mxu0
    %486 = vmatprep.mubr.f32.mxu0 0.0
    %487 = vmatmul.mubr.f32.gmra.mrb[0].mxu0 %v337
    %v488 = vpop.f32.mrb[0].mxu0
    %v489 = vadd.f32 0.0, %v488
    %v490 = vpop.f32.mrb[0].mxu0
    %491 = vmatprep.mubr.f32.mxu0 0.0
    %492 = vmatmul.mubr.f32.gmra.mrb[0].mxu0 %v338
    %v493 = vpop.f32.mrb[0].mxu0
    %v494 = vadd.f32 0.0, %v493
    %v495 = vpop.f32.mrb[0].mxu0
    %496 = vmatprep.mubr.f32.mxu0 0.0
    %497 = vmatmul.mubr.f32.gmra.mrb[0].mxu0 %v339
    %v498 = vpop.f32.mrb[0].mxu0
    %v499 = vadd.f32 0.0, %v498
    %v500 = vpop.f32.mrb[0].mxu0
    %501 = vdwg.mxu0
    %v502 = vmul.f32 %v292, %v424
    %v503 = vmul.f32 %v293, %v429
    %v504 = vmul.f32 %v294, %v434
    %v505 = vmul.f32 %v295, %v439
    %v506 = vmul.f32 %v296, %v444
    %v507 = vmul.f32 %v297, %v449
    %v508 = vmul.f32 %v298, %v454
    %v509 = vmul.f32 %v299, %v459
    %v510 = vmul.f32 %v300, %v464
    %v511 = vmul.f32 %v301, %v469
    %v512 = vmul.f32 %v302, %v474
    %v513 = vmul.f32 %v303, %v479
    %v514 = vmul.f32 %v304, %v484
    %v515 = vmul.f32 %v305, %v489
    %v516 = vmul.f32 %v306, %v494
    %v517 = vmul.f32 %v307, %v499
    %v519 = vlaneseq
    %v520 = vshrl.u32 %v519, 7
    %v521 = vsub.s32 0, %v520
    %v522 = vrot.slane %v356, %v521
    %524 = vmatprep.subr.mxu0 0.0
    %525 = vmatpush1.msra.mxu0 %v502
    %526 = vmatprep.subr.mxu0 0.0
    %527 = vmatpush1.msra.mxu0 %v503
    %528 = vmatprep.subr.mxu0 0.0
    %529 = vmatpush1.msra.mxu0 %v504
    %530 = vmatprep.subr.mxu0 0.0
    %531 = vmatpush1.msra.mxu0 %v505
    %532 = vmatprep.subr.mxu0 0.0
    %533 = vmatpush1.msra.mxu0 %v506
    %534 = vmatprep.subr.mxu0 0.0
    %535 = vmatpush1.msra.mxu0 %v507
    %536 = vmatprep.subr.mxu0 0.0
    %537 = vmatpush1.msra.mxu0 %v508
    %538 = vmatprep.subr.mxu0 0.0
    %539 = vmatpush1.msra.mxu0 %v509
    %540 = vmatprep.subr.mxu0 0.0
    %541 = vmatpush1.msra.mxu0 %v510
    %542 = vmatprep.subr.mxu0 0.0
    %543 = vmatpush1.msra.mxu0 %v511
    %544 = vmatprep.subr.mxu0 0.0
    %545 = vmatpush1.msra.mxu0 %v512
    %546 = vmatprep.subr.mxu0 0.0
    %547 = vmatpush1.msra.mxu0 %v513
    %548 = vmatprep.subr.mxu0 0.0
    %549 = vmatpush1.msra.mxu0 %v514
    %550 = vmatprep.subr.mxu0 0.0
    %551 = vmatpush1.msra.mxu0 %v515
    %552 = vmatprep.subr.mxu0 0.0
    %553 = vmatpush1.msra.mxu0 %v516
    %554 = vmatprep.subr.mxu0 0.0
    %555 = vmatpush1.msra.mxu0 %v517
    %556 = vmatprep.subr.mxu0 0.0
    %557 = vmatpush1.msra.mxu0 0.0
    %558 = vmatprep.subr.mxu0 0.0
    %559 = vmatpush1.msra.mxu0 0.0
    %560 = vmatprep.subr.mxu0 0.0
    %561 = vmatpush1.msra.mxu0 0.0
    %562 = vmatprep.subr.mxu0 0.0
    %563 = vmatpush1.msra.mxu0 0.0
    %564 = vmatprep.subr.mxu0 0.0
    %565 = vmatpush1.msra.mxu0 0.0
    %566 = vmatprep.subr.mxu0 0.0
    %567 = vmatpush1.msra.mxu0 0.0
    %568 = vmatprep.subr.mxu0 0.0
    %569 = vmatpush1.msra.mxu0 0.0
    %570 = vmatprep.subr.mxu0 0.0
    %571 = vmatpush1.msra.mxu0 0.0
    %572 = vmatprep.subr.mxu0 0.0
    %573 = vmatpush1.msra.mxu0 0.0
    %574 = vmatprep.subr.mxu0 0.0
    %575 = vmatpush1.msra.mxu0 0.0
    %576 = vmatprep.subr.mxu0 0.0
    %577 = vmatpush1.msra.mxu0 0.0
    %578 = vmatprep.subr.mxu0 0.0
    %579 = vmatpush1.msra.mxu0 0.0
    %580 = vmatprep.subr.mxu0 0.0
    %581 = vmatpush1.msra.mxu0 0.0
    %582 = vmatprep.subr.mxu0 0.0
    %583 = vmatpush1.msra.mxu0 0.0
    %584 = vmatprep.subr.mxu0 0.0
    %585 = vmatpush1.msra.mxu0 0.0
    %586 = vmatprep.subr.mxu0 0.0
    %587 = vmatpush1.msra.mxu0 0.0
    %588 = vmatprep.mubr.f32.mxu0 0.0
    %589 = vmatmul.mubr.f32.gmra.mrb[0].mxu0 %v308
    %v590 = vpop.f32.mrb[0].mxu0
    %v591 = vadd.f32 %v522, %v590
    %v592 = vpop.f32.mrb[0].mxu0
    %593 = vmatprep.mubr.f32.mxu0 0.0
    %594 = vmatmul.mubr.f32.gmra.mrb[0].mxu0 %v309
    %v595 = vpop.f32.mrb[0].mxu0
    %v596 = vadd.f32 %v522, %v595
    %v597 = vpop.f32.mrb[0].mxu0
    %598 = vmatprep.mubr.f32.mxu0 0.0
    %599 = vmatmul.mubr.f32.gmra.mrb[0].mxu0 %v310
    %v600 = vpop.f32.mrb[0].mxu0
    %v601 = vadd.f32 %v522, %v600
    %v602 = vpop.f32.mrb[0].mxu0
    %603 = vmatprep.mubr.f32.mxu0 0.0
    %604 = vmatmul.mubr.f32.gmra.mrb[0].mxu0 %v311
    %v605 = vpop.f32.mrb[0].mxu0
    %v606 = vadd.f32 %v522, %v605
    %v607 = vpop.f32.mrb[0].mxu0
    %608 = vmatprep.mubr.f32.mxu0 0.0
    %609 = vmatmul.mubr.f32.gmra.mrb[0].mxu0 %v312
    %v610 = vpop.f32.mrb[0].mxu0
    %v611 = vadd.f32 %v522, %v610
    %v612 = vpop.f32.mrb[0].mxu0
    %613 = vmatprep.mubr.f32.mxu0 0.0
    %614 = vmatmul.mubr.f32.gmra.mrb[0].mxu0 %v313
    %v615 = vpop.f32.mrb[0].mxu0
    %v616 = vadd.f32 %v522, %v615
    %v617 = vpop.f32.mrb[0].mxu0
    %618 = vmatprep.mubr.f32.mxu0 0.0
    %619 = vmatmul.mubr.f32.gmra.mrb[0].mxu0 %v314
    %v620 = vpop.f32.mrb[0].mxu0
    %v621 = vadd.f32 %v522, %v620
    %v622 = vpop.f32.mrb[0].mxu0
    %623 = vmatprep.mubr.f32.mxu0 0.0
    %624 = vmatmul.mubr.f32.gmra.mrb[0].mxu0 %v315
    %v625 = vpop.f32.mrb[0].mxu0
    %v626 = vadd.f32 %v522, %v625
    %v627 = vpop.f32.mrb[0].mxu0
    %628 = vmatprep.mubr.f32.mxu0 0.0
    %629 = vmatmul.mubr.f32.gmra.mrb[0].mxu0 %v316
    %v630 = vpop.f32.mrb[0].mxu0
    %v631 = vadd.f32 %v522, %v630
    %v632 = vpop.f32.mrb[0].mxu0
    %633 = vmatprep.mubr.f32.mxu0 0.0
    %634 = vmatmul.mubr.f32.gmra.mrb[0].mxu0 %v317
    %v635 = vpop.f32.mrb[0].mxu0
    %v636 = vadd.f32 %v522, %v635
    %v637 = vpop.f32.mrb[0].mxu0
    %638 = vmatprep.mubr.f32.mxu0 0.0
    %639 = vmatmul.mubr.f32.gmra.mrb[0].mxu0 %v318
    %v640 = vpop.f32.mrb[0].mxu0
    %v641 = vadd.f32 %v522, %v640
    %v642 = vpop.f32.mrb[0].mxu0
    %643 = vmatprep.mubr.f32.mxu0 0.0
    %644 = vmatmul.mubr.f32.gmra.mrb[0].mxu0 %v319
    %v645 = vpop.f32.mrb[0].mxu0
    %v646 = vadd.f32 %v522, %v645
    %v647 = vpop.f32.mrb[0].mxu0
    %648 = vmatprep.mubr.f32.mxu0 0.0
    %649 = vmatmul.mubr.f32.gmra.mrb[0].mxu0 %v320
    %v650 = vpop.f32.mrb[0].mxu0
    %v651 = vadd.f32 %v522, %v650
    %v652 = vpop.f32.mrb[0].mxu0
    %653 = vmatprep.mubr.f32.mxu0 0.0
    %654 = vmatmul.mubr.f32.gmra.mrb[0].mxu0 %v321
    %v655 = vpop.f32.mrb[0].mxu0
    %v656 = vadd.f32 %v522, %v655
    %v657 = vpop.f32.mrb[0].mxu0
    %658 = vmatprep.mubr.f32.mxu0 0.0
    %659 = vmatmul.mubr.f32.gmra.mrb[0].mxu0 %v322
    %v660 = vpop.f32.mrb[0].mxu0
    %v661 = vadd.f32 %v522, %v660
    %v662 = vpop.f32.mrb[0].mxu0
    %663 = vmatprep.mubr.f32.mxu0 0.0
    %664 = vmatmul.mubr.f32.gmra.mrb[0].mxu0 %v323
    %v665 = vpop.f32.mrb[0].mxu0
    %v666 = vadd.f32 %v522, %v665
    %v667 = vpop.f32.mrb[0].mxu0
    %668 = vdwg.mxu0
    %v669 = vmax.f32 %v591, 0.0
    %v670 = vmax.f32 %v596, 0.0
    %v671 = vmax.f32 %v601, 0.0
    %v672 = vmax.f32 %v606, 0.0
    %v673 = vmax.f32 %v611, 0.0
    %v674 = vmax.f32 %v616, 0.0
    %v675 = vmax.f32 %v621, 0.0
    %v676 = vmax.f32 %v626, 0.0
    %v677 = vmax.f32 %v631, 0.0
    %v678 = vmax.f32 %v636, 0.0
    %v679 = vmax.f32 %v641, 0.0
    %v680 = vmax.f32 %v646, 0.0
    %v681 = vmax.f32 %v651, 0.0
    %v682 = vmax.f32 %v656, 0.0
    %v683 = vmax.f32 %v661, 0.0
    %v684 = vmax.f32 %v666, 0.0
    %685 = vst [vmem:[#allocation10] sm:$0xff] %v669
    %686 = vst [vmem:[#allocation10 + $0x8] sm:$0xff] %v670
    %687 = vst [vmem:[#allocation10 + $0x10] sm:$0xff] %v671
    %688 = vst [vmem:[#allocation10 + $0x18] sm:$0xff] %v672
    %689 = vst [vmem:[#allocation10 + $0x20] sm:$0xff] %v673
    %690 = vst [vmem:[#allocation10 + $0x28] sm:$0xff] %v674
    %691 = vst [vmem:[#allocation10 + $0x30] sm:$0xff] %v675
    %692 = vst [vmem:[#allocation10 + $0x38] sm:$0xff] %v676
    %693 = vst [vmem:[#allocation10 + $0x40] sm:$0xff] %v677
    %694 = vst [vmem:[#allocation10 + $0x48] sm:$0xff] %v678
    %695 = vst [vmem:[#allocation10 + $0x50] sm:$0xff] %v679
    %696 = vst [vmem:[#allocation10 + $0x58] sm:$0xff] %v680
    %697 = vst [vmem:[#allocation10 + $0x60] sm:$0xff] %v681
    %698 = vst [vmem:[#allocation10 + $0x68] sm:$0xff] %v682
    %699 = vst [vmem:[#allocation10 + $0x70] sm:$0xff] %v683
    %700 = vst [vmem:[#allocation10 + $0x78] sm:$0xff] %v684
    %v701 = vld [vmem:[#allocation8] sm:$0xff]
    %v702 = vld [vmem:[#allocation8 + $0x8] sm:$0xff]
    %v703 = vld [vmem:[#allocation8 + $0x10] sm:$0xff]
    %v704 = vld [vmem:[#allocation8 + $0x18] sm:$0xff]
    %v705 = vld [vmem:[#allocation8 + $0x20] sm:$0xff]
    %v706 = vld [vmem:[#allocation8 + $0x28] sm:$0xff]
    %v707 = vld [vmem:[#allocation8 + $0x30] sm:$0xff]
    %v708 = vld [vmem:[#allocation8 + $0x38] sm:$0xff]
    %v709 = vld [vmem:[#allocation8 + $0x40] sm:$0xff]
    %v710 = vld [vmem:[#allocation8 + $0x48] sm:$0xff]
    %v711 = vld [vmem:[#allocation8 + $0x50] sm:$0xff]
    %v712 = vld [vmem:[#allocation8 + $0x58] sm:$0xff]
    %v713 = vld [vmem:[#allocation8 + $0x60] sm:$0xff]
    %v714 = vld [vmem:[#allocation8 + $0x68] sm:$0xff]
    %v715 = vld [vmem:[#allocation8 + $0x70] sm:$0xff]
    %v716 = vld [vmem:[#allocation8 + $0x78] sm:$0xff]
    %v717 = vld [vmem:[%s5] sm:$0x1]
    %718 = vmatprep.subr.mxu0 0.0
    %719 = vmatpush1.msra.mxu0 %v701
    %720 = vmatprep.subr.mxu0 0.0
    %721 = vmatpush1.msra.mxu0 %v702
    %722 = vmatprep.subr.mxu0 0.0
    %723 = vmatpush1.msra.mxu0 %v703
    %724 = vmatprep.subr.mxu0 0.0
    %725 = vmatpush1.msra.mxu0 %v704
    %726 = vmatprep.subr.mxu0 0.0
    %727 = vmatpush1.msra.mxu0 %v705
    %728 = vmatprep.subr.mxu0 0.0
    %729 = vmatpush1.msra.mxu0 %v706
    %730 = vmatprep.subr.mxu0 0.0
    %731 = vmatpush1.msra.mxu0 %v707
    %732 = vmatprep.subr.mxu0 0.0
    %733 = vmatpush1.msra.mxu0 %v708
    %734 = vmatprep.subr.mxu0 0.0
    %735 = vmatpush1.msra.mxu0 %v709
    %736 = vmatprep.subr.mxu0 0.0
    %737 = vmatpush1.msra.mxu0 %v710
    %738 = vmatprep.subr.mxu0 0.0
    %739 = vmatpush1.msra.mxu0 %v711
    %740 = vmatprep.subr.mxu0 0.0
    %741 = vmatpush1.msra.mxu0 %v712
    %742 = vmatprep.subr.mxu0 0.0
    %743 = vmatpush1.msra.mxu0 %v713
    %744 = vmatprep.subr.mxu0 0.0
    %745 = vmatpush1.msra.mxu0 %v714
    %746 = vmatprep.subr.mxu0 0.0
    %747 = vmatpush1.msra.mxu0 %v715
    %748 = vmatprep.subr.mxu0 0.0
    %749 = vmatpush1.msra.mxu0 %v716
    %750 = vmatprep.subr.mxu0 0.0
    %751 = vmatpush1.msra.mxu0 0.0
    %752 = vmatprep.subr.mxu0 0.0
    %753 = vmatpush1.msra.mxu0 0.0
    %754 = vmatprep.subr.mxu0 0.0
    %755 = vmatpush1.msra.mxu0 0.0
    %756 = vmatprep.subr.mxu0 0.0
    %757 = vmatpush1.msra.mxu0 0.0
    %758 = vmatprep.subr.mxu0 0.0
    %759 = vmatpush1.msra.mxu0 0.0
    %760 = vmatprep.subr.mxu0 0.0
    %761 = vmatpush1.msra.mxu0 0.0
    %762 = vmatprep.subr.mxu0 0.0
    %763 = vmatpush1.msra.mxu0 0.0
    %764 = vmatprep.subr.mxu0 0.0
    %765 = vmatpush1.msra.mxu0 0.0
    %766 = vmatprep.subr.mxu0 0.0
    %767 = vmatpush1.msra.mxu0 0.0
    %768 = vmatprep.subr.mxu0 0.0
    %769 = vmatpush1.msra.mxu0 0.0
    %770 = vmatprep.subr.mxu0 0.0
    %771 = vmatpush1.msra.mxu0 0.0
    %772 = vmatprep.subr.mxu0 0.0
    %773 = vmatpush1.msra.mxu0 0.0
    %774 = vmatprep.subr.mxu0 0.0
    %775 = vmatpush1.msra.mxu0 0.0
    %776 = vmatprep.subr.mxu0 0.0
    %777 = vmatpush1.msra.mxu0 0.0
    %778 = vmatprep.subr.mxu0 0.0
    %779 = vmatpush1.msra.mxu0 0.0
    %780 = vmatprep.subr.mxu0 0.0
    %781 = vmatpush1.msra.mxu0 0.0
    %782 = vmatprep.mubr.f32.mxu0 0.0
    %783 = vmatmul.mubr.f32.gmra.mrb[0].mxu0 %v669
    %v784 = vpop.f32.mrb[0].mxu0
    %v785 = vadd.f32 0.0, %v784
    %v786 = vpop.f32.mrb[0].mxu0
    %787 = vmatprep.mubr.f32.mxu0 0.0
    %788 = vmatmul.mubr.f32.gmra.mrb[0].mxu0 %v670
    %v789 = vpop.f32.mrb[0].mxu0
    %v790 = vadd.f32 0.0, %v789
    %v791 = vpop.f32.mrb[0].mxu0
    %792 = vmatprep.mubr.f32.mxu0 0.0
    %793 = vmatmul.mubr.f32.gmra.mrb[0].mxu0 %v671
    %v794 = vpop.f32.mrb[0].mxu0
    %v795 = vadd.f32 0.0, %v794
    %v796 = vpop.f32.mrb[0].mxu0
    %797 = vmatprep.mubr.f32.mxu0 0.0
    %798 = vmatmul.mubr.f32.gmra.mrb[0].mxu0 %v672
    %v799 = vpop.f32.mrb[0].mxu0
    %v800 = vadd.f32 0.0, %v799
    %v801 = vpop.f32.mrb[0].mxu0
    %802 = vmatprep.mubr.f32.mxu0 0.0
    %803 = vmatmul.mubr.f32.gmra.mrb[0].mxu0 %v673
    %v804 = vpop.f32.mrb[0].mxu0
    %v805 = vadd.f32 0.0, %v804
    %v806 = vpop.f32.mrb[0].mxu0
    %807 = vmatprep.mubr.f32.mxu0 0.0
    %808 = vmatmul.mubr.f32.gmra.mrb[0].mxu0 %v674
    %v809 = vpop.f32.mrb[0].mxu0
    %v810 = vadd.f32 0.0, %v809
    %v811 = vpop.f32.mrb[0].mxu0
    %812 = vmatprep.mubr.f32.mxu0 0.0
    %813 = vmatmul.mubr.f32.gmra.mrb[0].mxu0 %v675
    %v814 = vpop.f32.mrb[0].mxu0
    %v815 = vadd.f32 0.0, %v814
    %v816 = vpop.f32.mrb[0].mxu0
    %817 = vmatprep.mubr.f32.mxu0 0.0
    %818 = vmatmul.mubr.f32.gmra.mrb[0].mxu0 %v676
    %v819 = vpop.f32.mrb[0].mxu0
    %v820 = vadd.f32 0.0, %v819
    %v821 = vpop.f32.mrb[0].mxu0
    %822 = vmatprep.mubr.f32.mxu0 0.0
    %823 = vmatmul.mubr.f32.gmra.mrb[0].mxu0 %v677
    %v824 = vpop.f32.mrb[0].mxu0
    %v825 = vadd.f32 0.0, %v824
    %v826 = vpop.f32.mrb[0].mxu0
    %827 = vmatprep.mubr.f32.mxu0 0.0
    %828 = vmatmul.mubr.f32.gmra.mrb[0].mxu0 %v678
    %v829 = vpop.f32.mrb[0].mxu0
    %v830 = vadd.f32 0.0, %v829
    %v831 = vpop.f32.mrb[0].mxu0
    %832 = vmatprep.mubr.f32.mxu0 0.0
    %833 = vmatmul.mubr.f32.gmra.mrb[0].mxu0 %v679
    %v834 = vpop.f32.mrb[0].mxu0
    %v835 = vadd.f32 0.0, %v834
    %v836 = vpop.f32.mrb[0].mxu0
    %837 = vmatprep.mubr.f32.mxu0 0.0
    %838 = vmatmul.mubr.f32.gmra.mrb[0].mxu0 %v680
    %v839 = vpop.f32.mrb[0].mxu0
    %v840 = vadd.f32 0.0, %v839
    %v841 = vpop.f32.mrb[0].mxu0
    %842 = vmatprep.mubr.f32.mxu0 0.0
    %843 = vmatmul.mubr.f32.gmra.mrb[0].mxu0 %v681
    %v844 = vpop.f32.mrb[0].mxu0
    %v845 = vadd.f32 0.0, %v844
    %v846 = vpop.f32.mrb[0].mxu0
    %847 = vmatprep.mubr.f32.mxu0 0.0
    %848 = vmatmul.mubr.f32.gmra.mrb[0].mxu0 %v682
    %v849 = vpop.f32.mrb[0].mxu0
    %v850 = vadd.f32 0.0, %v849
    %v851 = vpop.f32.mrb[0].mxu0
    %852 = vmatprep.mubr.f32.mxu0 0.0
    %853 = vmatmul.mubr.f32.gmra.mrb[0].mxu0 %v683
    %v854 = vpop.f32.mrb[0].mxu0
    %v855 = vadd.f32 0.0, %v854
    %v856 = vpop.f32.mrb[0].mxu0
    %857 = vmatprep.mubr.f32.mxu0 0.0
    %858 = vmatmul.mubr.f32.gmra.mrb[0].mxu0 %v684
    %v859 = vpop.f32.mrb[0].mxu0
    %v860 = vadd.f32 0.0, %v859
    %v861 = vpop.f32.mrb[0].mxu0
    %862 = vdwg.mxu0
    %v863 = vmul.f32 %v292, %v785
    %v864 = vmul.f32 %v293, %v790
    %v865 = vmul.f32 %v294, %v795
    %v866 = vmul.f32 %v295, %v800
    %v867 = vmul.f32 %v296, %v805
    %v868 = vmul.f32 %v297, %v810
    %v869 = vmul.f32 %v298, %v815
    %v870 = vmul.f32 %v299, %v820
    %v871 = vmul.f32 %v300, %v825
    %v872 = vmul.f32 %v301, %v830
    %v873 = vmul.f32 %v302, %v835
    %v874 = vmul.f32 %v303, %v840
    %v875 = vmul.f32 %v304, %v845
    %v876 = vmul.f32 %v305, %v850
    %v877 = vmul.f32 %v306, %v855
    %v878 = vmul.f32 %v307, %v860
    %v880 = vlaneseq
    %v881 = vshrl.u32 %v880, 7
    %v882 = vsub.s32 0, %v881
    %v883 = vrot.slane %v717, %v882
    %885 = vmatprep.subr.mxu0 0.0
    %886 = vmatpush1.msra.mxu0 %v863
    %887 = vmatprep.subr.mxu0 0.0
    %888 = vmatpush1.msra.mxu0 %v864
    %889 = vmatprep.subr.mxu0 0.0
    %890 = vmatpush1.msra.mxu0 %v865
    %891 = vmatprep.subr.mxu0 0.0
    %892 = vmatpush1.msra.mxu0 %v866
    %893 = vmatprep.subr.mxu0 0.0
    %894 = vmatpush1.msra.mxu0 %v867
    %895 = vmatprep.subr.mxu0 0.0
    %896 = vmatpush1.msra.mxu0 %v868
    %897 = vmatprep.subr.mxu0 0.0
    %898 = vmatpush1.msra.mxu0 %v869
    %899 = vmatprep.subr.mxu0 0.0
    %900 = vmatpush1.msra.mxu0 %v870
    %901 = vmatprep.subr.mxu0 0.0
    %902 = vmatpush1.msra.mxu0 %v871
    %903 = vmatprep.subr.mxu0 0.0
    %904 = vmatpush1.msra.mxu0 %v872
    %905 = vmatprep.subr.mxu0 0.0
    %906 = vmatpush1.msra.mxu0 %v873
    %907 = vmatprep.subr.mxu0 0.0
    %908 = vmatpush1.msra.mxu0 %v874
    %909 = vmatprep.subr.mxu0 0.0
    %910 = vmatpush1.msra.mxu0 %v875
    %911 = vmatprep.subr.mxu0 0.0
    %912 = vmatpush1.msra.mxu0 %v876
    %913 = vmatprep.subr.mxu0 0.0
    %914 = vmatpush1.msra.mxu0 %v877
    %915 = vmatprep.subr.mxu0 0.0
    %916 = vmatpush1.msra.mxu0 %v878
    %917 = vmatprep.subr.mxu0 0.0
    %918 = vmatpush1.msra.mxu0 0.0
    %919 = vmatprep.subr.mxu0 0.0
    %920 = vmatpush1.msra.mxu0 0.0
    %921 = vmatprep.subr.mxu0 0.0
    %922 = vmatpush1.msra.mxu0 0.0
    %923 = vmatprep.subr.mxu0 0.0
    %924 = vmatpush1.msra.mxu0 0.0
    %925 = vmatprep.subr.mxu0 0.0
    %926 = vmatpush1.msra.mxu0 0.0
    %927 = vmatprep.subr.mxu0 0.0
    %928 = vmatpush1.msra.mxu0 0.0
    %929 = vmatprep.subr.mxu0 0.0
    %930 = vmatpush1.msra.mxu0 0.0
    %931 = vmatprep.subr.mxu0 0.0
    %932 = vmatpush1.msra.mxu0 0.0
    %933 = vmatprep.subr.mxu0 0.0
    %934 = vmatpush1.msra.mxu0 0.0
    %935 = vmatprep.subr.mxu0 0.0
    %936 = vmatpush1.msra.mxu0 0.0
    %937 = vmatprep.subr.mxu0 0.0
    %938 = vmatpush1.msra.mxu0 0.0
    %939 = vmatprep.subr.mxu0 0.0
    %940 = vmatpush1.msra.mxu0 0.0
    %941 = vmatprep.subr.mxu0 0.0
    %942 = vmatpush1.msra.mxu0 0.0
    %943 = vmatprep.subr.mxu0 0.0
    %944 = vmatpush1.msra.mxu0 0.0
    %945 = vmatprep.subr.mxu0 0.0
    %946 = vmatpush1.msra.mxu0 0.0
    %947 = vmatprep.subr.mxu0 0.0
    %948 = vmatpush1.msra.mxu0 0.0
    %949 = vmatprep.mubr.f32.mxu0 0.0
    %950 = vmatmul.mubr.f32.gmra.mrb[0].mxu0 %v308
    %v951 = vpop.f32.mrb[0].mxu0
    %v952 = vadd.f32 %v883, %v951
    %v953 = vpop.f32.mrb[0].mxu0
    %954 = vmatprep.mubr.f32.mxu0 0.0
    %955 = vmatmul.mubr.f32.gmra.mrb[0].mxu0 %v309
    %v956 = vpop.f32.mrb[0].mxu0
    %v957 = vadd.f32 %v883, %v956
    %v958 = vpop.f32.mrb[0].mxu0
    %959 = vmatprep.mubr.f32.mxu0 0.0
    %960 = vmatmul.mubr.f32.gmra.mrb[0].mxu0 %v310
    %v961 = vpop.f32.mrb[0].mxu0
    %v962 = vadd.f32 %v883, %v961
    %v963 = vpop.f32.mrb[0].mxu0
    %964 = vmatprep.mubr.f32.mxu0 0.0
    %965 = vmatmul.mubr.f32.gmra.mrb[0].mxu0 %v311
    %v966 = vpop.f32.mrb[0].mxu0
    %v967 = vadd.f32 %v883, %v966
    %v968 = vpop.f32.mrb[0].mxu0
    %969 = vmatprep.mubr.f32.mxu0 0.0
    %970 = vmatmul.mubr.f32.gmra.mrb[0].mxu0 %v312
    %v971 = vpop.f32.mrb[0].mxu0
    %v972 = vadd.f32 %v883, %v971
    %v973 = vpop.f32.mrb[0].mxu0
    %974 = vmatprep.mubr.f32.mxu0 0.0
    %975 = vmatmul.mubr.f32.gmra.mrb[0].mxu0 %v313
    %v976 = vpop.f32.mrb[0].mxu0
    %v977 = vadd.f32 %v883, %v976
    %v978 = vpop.f32.mrb[0].mxu0
    %979 = vmatprep.mubr.f32.mxu0 0.0
    %980 = vmatmul.mubr.f32.gmra.mrb[0].mxu0 %v314
    %v981 = vpop.f32.mrb[0].mxu0
    %v982 = vadd.f32 %v883, %v981
    %v983 = vpop.f32.mrb[0].mxu0
    %984 = vmatprep.mubr.f32.mxu0 0.0
    %985 = vmatmul.mubr.f32.gmra.mrb[0].mxu0 %v315
    %v986 = vpop.f32.mrb[0].mxu0
    %v987 = vadd.f32 %v883, %v986
    %v988 = vpop.f32.mrb[0].mxu0
    %989 = vmatprep.mubr.f32.mxu0 0.0
    %990 = vmatmul.mubr.f32.gmra.mrb[0].mxu0 %v316
    %v991 = vpop.f32.mrb[0].mxu0
    %v992 = vadd.f32 %v883, %v991
    %v993 = vpop.f32.mrb[0].mxu0
    %994 = vmatprep.mubr.f32.mxu0 0.0
    %995 = vmatmul.mubr.f32.gmra.mrb[0].mxu0 %v317
    %v996 = vpop.f32.mrb[0].mxu0
    %v997 = vadd.f32 %v883, %v996
    %v998 = vpop.f32.mrb[0].mxu0
    %999 = vmatprep.mubr.f32.mxu0 0.0
    %1000 = vmatmul.mubr.f32.gmra.mrb[0].mxu0 %v318
    %v1001 = vpop.f32.mrb[0].mxu0
    %v1002 = vadd.f32 %v883, %v1001
    %v1003 = vpop.f32.mrb[0].mxu0
    %1004 = vmatprep.mubr.f32.mxu0 0.0
    %1005 = vmatmul.mubr.f32.gmra.mrb[0].mxu0 %v319
    %v1006 = vpop.f32.mrb[0].mxu0
    %v1007 = vadd.f32 %v883, %v1006
    %v1008 = vpop.f32.mrb[0].mxu0
    %1009 = vmatprep.mubr.f32.mxu0 0.0
    %1010 = vmatmul.mubr.f32.gmra.mrb[0].mxu0 %v320
    %v1011 = vpop.f32.mrb[0].mxu0
    %v1012 = vadd.f32 %v883, %v1011
    %v1013 = vpop.f32.mrb[0].mxu0
    %1014 = vmatprep.mubr.f32.mxu0 0.0
    %1015 = vmatmul.mubr.f32.gmra.mrb[0].mxu0 %v321
    %v1016 = vpop.f32.mrb[0].mxu0
    %v1017 = vadd.f32 %v883, %v1016
    %v1018 = vpop.f32.mrb[0].mxu0
    %1019 = vmatprep.mubr.f32.mxu0 0.0
    %1020 = vmatmul.mubr.f32.gmra.mrb[0].mxu0 %v322
    %v1021 = vpop.f32.mrb[0].mxu0
    %v1022 = vadd.f32 %v883, %v1021
    %v1023 = vpop.f32.mrb[0].mxu0
    %1024 = vmatprep.mubr.f32.mxu0 0.0
    %1025 = vmatmul.mubr.f32.gmra.mrb[0].mxu0 %v323
    %v1026 = vpop.f32.mrb[0].mxu0
    %v1027 = vadd.f32 %v883, %v1026
    %v1028 = vpop.f32.mrb[0].mxu0
    %1029 = vdwg.mxu0
    %v1030 = vmax.f32 %v952, 0.0
    %v1031 = vmax.f32 %v957, 0.0
    %v1032 = vmax.f32 %v962, 0.0
    %v1033 = vmax.f32 %v967, 0.0
    %v1034 = vmax.f32 %v972, 0.0
    %v1035 = vmax.f32 %v977, 0.0
    %v1036 = vmax.f32 %v982, 0.0
    %v1037 = vmax.f32 %v987, 0.0
    %v1038 = vmax.f32 %v992, 0.0
    %v1039 = vmax.f32 %v997, 0.0
    %v1040 = vmax.f32 %v1002, 0.0
    %v1041 = vmax.f32 %v1007, 0.0
    %v1042 = vmax.f32 %v1012, 0.0
    %v1043 = vmax.f32 %v1017, 0.0
    %v1044 = vmax.f32 %v1022, 0.0
    %v1045 = vmax.f32 %v1027, 0.0
    %1046 = vst [vmem:[#allocation11] sm:$0xff] %v1030
    %1047 = vst [vmem:[#allocation11 + $0x8] sm:$0xff] %v1031
    %1048 = vst [vmem:[#allocation11 + $0x10] sm:$0xff] %v1032
    %1049 = vst [vmem:[#allocation11 + $0x18] sm:$0xff] %v1033
    %1050 = vst [vmem:[#allocation11 + $0x20] sm:$0xff] %v1034
    %1051 = vst [vmem:[#allocation11 + $0x28] sm:$0xff] %v1035
    %1052 = vst [vmem:[#allocation11 + $0x30] sm:$0xff] %v1036
    %1053 = vst [vmem:[#allocation11 + $0x38] sm:$0xff] %v1037
    %1054 = vst [vmem:[#allocation11 + $0x40] sm:$0xff] %v1038
    %1055 = vst [vmem:[#allocation11 + $0x48] sm:$0xff] %v1039
    %1056 = vst [vmem:[#allocation11 + $0x50] sm:$0xff] %v1040
    %1057 = vst [vmem:[#allocation11 + $0x58] sm:$0xff] %v1041
    %1058 = vst [vmem:[#allocation11 + $0x60] sm:$0xff] %v1042
    %1059 = vst [vmem:[#allocation11 + $0x68] sm:$0xff] %v1043
    %1060 = vst [vmem:[#allocation11 + $0x70] sm:$0xff] %v1044
    %1061 = vst [vmem:[#allocation11 + $0x78] sm:$0xff] %v1045
    // Predicated region
    $region42: #{tpu_custom_call.1} parent=1 // pred_check
      _
    $region43: #{tpu_custom_call.1} parent=1 // pred_check_branch
      %1063 = sbr.rel (0) target = $region45
    $region44: #{tpu_custom_call.1} parent=1 // pred_region
      %s1065 = ssub.s32 2048, 2048
      %1066 = vsyncadd [#allocation4], %s1065
      %s1067 = sshll.u32 [#allocation10], 4
      %s1068 = int_to_ptr.vmem [resolvable:$true] %s1067
      %1073 = dma.vmem_to_hbm [thread:$0]  %s1068, 2048, %s6, [#allocation4], 128, 128, 8
    $region45: #{tpu_custom_call.1} parent=1 // pred_fallthru
      _
    // Predicated region
    $region46: #{tpu_custom_call.1} parent=1 // pred_check
      _
    $region47: #{tpu_custom_call.1} parent=1 // pred_check_branch
      %1075 = sbr.rel (0) target = $region49
    $region48: #{tpu_custom_call.1} parent=1 // pred_region
      %s1077 = ssub.s32 2048, 2048
      %1078 = vsyncadd [#allocation12], %s1077
      %s1079 = sshll.u32 [#allocation11], 4
      %s1080 = int_to_ptr.vmem [resolvable:$true] %s1079
      %1085 = dma.vmem_to_hbm [thread:$0]  %s1080, 2048, %s7, [#allocation12], 128, 128, 8
    $region49: #{tpu_custom_call.1} parent=1 // pred_fallthru
      _
    // Predicated region
    $region50: #{tpu_custom_call.1} parent=1 // pred_check
      _
    $region51: #{tpu_custom_call.1} parent=1 // pred_check_branch
      %1087 = sbr.rel (0) target = $region53
    $region52: #{tpu_custom_call.1} parent=1 // pred_region
      %1088 = dma.done [#allocation4], 2048
    $region53: #{tpu_custom_call.1} parent=1 // pred_fallthru
      _
    // Predicated region
    $region54: #{tpu_custom_call.1} parent=1 // pred_check
      _
    $region55: #{tpu_custom_call.1} parent=1 // pred_check_branch
      %1090 = sbr.rel (0) target = $region57
    $region56: #{tpu_custom_call.1} parent=1 // pred_region
      %1091 = dma.done [#allocation12], 2048
    $region57: #{tpu_custom_call.1} parent=1 // pred_fallthru
      _
    %1092 = vsyncpa [#allocation3], 1
    %1093 = vsyncpa [#allocation6], 1
    %1094 = vsyncpa [#allocation9], 1
    %1095 = vsyncpa [#allocation4], 1
    %1096 = vsyncpa [#allocation12], 1

</llo_original>
